<compile_context>
chip_gen: v6e
topology: v6e:2x2x1
jax: 0.10.0
libtpu: 0.0.40
codegen_flags: <defaults>
</compile_context>

<pallas_src>
import functools

import jax
import jax.numpy as jnp
from jax.experimental import pallas as pl
from jax.experimental.pallas import tpu as pltpu

LOG_SIG_MAX = 2.0
LOG_SIG_MIN = -5.0
MEAN_MAX = 9.0
MEAN_MIN = -9.0


def _round_up(x, m):
    return ((x + m - 1) // m) * m


def actor_kernel(x_ref, w1_ref, w2_ref, b12_ref, wh_ref, bh_ref, out_ref, *,
                 action_dim):
    # x: (TB, in_dim) f32; weights bf16; biases f32.
    x = x_ref[...]

    # hidden layer 1 + SiLU (elementwise math in f32)
    h = jnp.dot(x.astype(jnp.bfloat16), w1_ref[...],
                preferred_element_type=jnp.float32)
    h = h + b12_ref[0:1, :]
    h = h * jax.nn.sigmoid(h)

    # hidden layer 2 + SiLU
    h = jnp.dot(h.astype(jnp.bfloat16), w2_ref[...],
                preferred_element_type=jnp.float32)
    h = h + b12_ref[1:2, :]
    h = h * jax.nn.sigmoid(h)

    # fused (mean || log_std) head, lane-padded to a multiple of 128
    head = jnp.dot(h.astype(jnp.bfloat16), wh_ref[...],
                   preferred_element_type=jnp.float32)
    head = head + bh_ref[...]

    col = jax.lax.broadcasted_iota(jnp.int32, head.shape, 1)
    mean_part = jnp.clip(head, MEAN_MIN, MEAN_MAX)
    std_part = jnp.exp(jnp.clip(head, LOG_SIG_MIN, LOG_SIG_MAX))
    # columns [0, A) -> clamped mean; columns [A, 2A) -> exp(clamped log_std);
    # padded columns beyond 2A are don't-care (sliced off in the wrapper).
    out_ref[...] = jnp.where(col < action_dim, mean_part, std_part)


def actor_forward(x, params, *, block_batch=256):
    """x: [B, input_dim] float32. params: dict of f32 weights/biases.

    Returns (mean, std), each [B, action_dim] float32.
    """
    B, input_dim = x.shape
    H = params["w1"].shape[1]
    A = params["wm"].shape[1]
    A_pad = _round_up(2 * A, 128)

    # ---- pack / cast parameters (cheap one-shot XLA ops per call) ----
    w1 = params["w1"].astype(jnp.bfloat16)                                   # [in, H]
    w2 = params["w2"].astype(jnp.bfloat16)                                   # [H, H]
    b12 = jnp.concatenate([params["b1"], params["b2"]], axis=0)              # [2, H]
    b12 = b12.astype(jnp.float32)
    wh = jnp.concatenate([params["wm"], params["ws"]], axis=1)               # [H, 2A]
    wh = jnp.pad(wh, ((0, 0), (0, A_pad - 2 * A))).astype(jnp.bfloat16)      # [H, A_pad]
    bh = jnp.concatenate([params["bm"], params["bs"]], axis=1)               # [1, 2A]
    bh = jnp.pad(bh, ((0, 0), (0, A_pad - 2 * A))).astype(jnp.float32)       # [1, A_pad]

    # ---- batch tiling (sublane multiple of 8) ----
    tb = max(8, min(_round_up(block_batch, 8), _round_up(B, 8)))
    B_pad = _round_up(B, tb)
    x_p = jnp.pad(x.astype(jnp.float32), ((0, B_pad - B), (0, 0)))
    grid = (B_pad // tb,)

    kernel = functools.partial(actor_kernel, action_dim=A)

    out = pl.pallas_call(
        kernel,
        out_shape=jax.ShapeDtypeStruct((B_pad, A_pad), jnp.float32),
        grid=grid,
        in_specs=[
            pl.BlockSpec((tb, input_dim), lambda i: (i, 0)),   # x tile (pipelined)
            pl.BlockSpec((input_dim, H), lambda i: (0, 0)),    # w1 (resident)
            pl.BlockSpec((H, H), lambda i: (0, 0)),            # w2 (resident)
            pl.BlockSpec((2, H), lambda i: (0, 0)),            # b1||b2 (resident)
            pl.BlockSpec((H, A_pad), lambda i: (0, 0)),        # wm||ws padded (resident)
            pl.BlockSpec((1, A_pad), lambda i: (0, 0)),        # bm||bs padded (resident)
        ],
        out_specs=pl.BlockSpec((tb, A_pad), lambda i: (i, 0)),
        compiler_params=pltpu.CompilerParams(
            dimension_semantics=("parallel",),   # batch-parallel (2 TCs on v7x)
            vmem_limit_bytes=32 * 1024 * 1024,   # safe on v5e/v6e/v7x
        ),
    )(x_p, w1, w2, b12, wh, bh)

    mean = out[:B, :A]
    std = out[:B, A:2 * A]
    return mean, std


def init_actor_params(key, input_dim, hidden_dim, action_dim, init_w=0.001):
    """Synthetic init mirroring the torch module's shapes.

    Weights stored [in, out] so the kernel computes y = x @ W + b (equivalent
    to nn.Linear's x @ W.T + b). Biases kept [1, out] for clean broadcasting.
    """
    keys = jax.random.split(key, 8)

    def unif(k, shape, bound):
        return jax.random.uniform(k, shape, jnp.float32, -bound, bound)

    b1_bound = 1.0 / jnp.sqrt(jnp.float32(input_dim))
    b2_bound = 1.0 / jnp.sqrt(jnp.float32(hidden_dim))

    return {
        "w1": unif(keys[0], (input_dim, hidden_dim), b1_bound),
        "b1": unif(keys[1], (1, hidden_dim), b1_bound),
        "w2": unif(keys[2], (hidden_dim, hidden_dim), b2_bound),
        "b2": unif(keys[3], (1, hidden_dim), b2_bound),
        "wm": unif(keys[4], (hidden_dim, action_dim), init_w),
        "bm": unif(keys[5], (1, action_dim), init_w),
        "ws": unif(keys[6], (hidden_dim, action_dim), init_w),
        "bs": unif(keys[7], (1, action_dim), init_w),
    }


def actor_forward_ref(x, params):
    """Pure-JAX f32 reference for correctness check."""
    def silu(v):
        return v * jax.nn.sigmoid(v)
    h = silu(x @ params["w1"] + params["b1"])
    h = silu(h @ params["w2"] + params["b2"])
    mean = jnp.clip(h @ params["wm"] + params["bm"], MEAN_MIN, MEAN_MAX)
    log_std = jnp.clip(h @ params["ws"] + params["bs"], LOG_SIG_MIN, LOG_SIG_MAX)
    return mean, jnp.exp(log_std)


if __name__ == "__main__":
    key = jax.random.PRNGKey(0)
    k_param, k_x1, k_x2 = jax.random.split(key, 3)

    input_dim = 16
    hidden_dim = 32
    action_dim = 8

    params = init_actor_params(k_param, input_dim, hidden_dim, action_dim)

    # Case 1: small batch (single grid step).
    x1 = jax.random.normal(k_x1, (4, input_dim), jnp.float32)
    mean1, std1 = actor_forward(x1, params)
    jax.block_until_ready((mean1, std1))
    mean1_ref, std1_ref = actor_forward_ref(x1, params)
    # bf16 matmul inputs with f32 accumulation -> loosened tolerance vs f32 ref.
    assert mean1.shape == (4, action_dim) and std1.shape == (4, action_dim)
    assert jnp.allclose(mean1, mean1_ref, atol=1e-2, rtol=1e-2)
    assert jnp.allclose(std1, std1_ref, atol=1e-2, rtol=1e-2)

    # Case 2: ragged batch that exercises the batch grid + padding path.
    x2 = jax.random.normal(k_x2, (37, input_dim), jnp.float32)
    mean2, std2 = actor_forward(x2, params, block_batch=16)  # grid of 3 steps
    jax.block_until_ready((mean2, std2))
    mean2_ref, std2_ref = actor_forward_ref(x2, params)
    assert mean2.shape == (37, action_dim) and std2.shape == (37, action_dim)
    assert jnp.allclose(mean2, mean2_ref, atol=1e-2, rtol=1e-2)
    assert jnp.allclose(std2, std2_ref, atol=1e-2, rtol=1e-2)

    print("KERNEL_OK")
</pallas_src>

<mosaic_0001>
module attributes {stable_mosaic.version = 11 : i64} {
  func.func @actor_kernel(%arg0: i32, %arg1: memref<8x16xf32, #tpu.memory_space<vmem>>, %arg2: memref<16x32xbf16, #tpu.memory_space<vmem>>, %arg3: memref<32x32xbf16, #tpu.memory_space<vmem>>, %arg4: memref<2x32xf32, #tpu.memory_space<vmem>>, %arg5: memref<32x128xbf16, #tpu.memory_space<vmem>>, %arg6: memref<1x128xf32, #tpu.memory_space<vmem>>, %arg7: memref<8x128xf32, #tpu.memory_space<vmem>>) attributes {dimension_semantics = [#tpu.dimension_semantics<parallel>], iteration_bounds = array<i64: 1>, scalar_prefetch = 0 : i64, scratch_operands = 0 : i64, tpu.core_type = #tpu.core_type<tc>, window_params = [{transform_indices = @transform_0, window_bounds = array<i64: 8, 16>}, {pipeline_mode = #tpu.pipeline_mode<synchronous>, transform_indices = @transform_1, window_bounds = array<i64: 16, 32>}, {pipeline_mode = #tpu.pipeline_mode<synchronous>, transform_indices = @transform_2, window_bounds = array<i64: 32, 32>}, {pipeline_mode = #tpu.pipeline_mode<synchronous>, transform_indices = @transform_3, window_bounds = array<i64: 2, 32>}, {pipeline_mode = #tpu.pipeline_mode<synchronous>, transform_indices = @transform_4, window_bounds = array<i64: 32, 128>}, {pipeline_mode = #tpu.pipeline_mode<synchronous>, transform_indices = @transform_5, window_bounds = array<i64: 1, 128>}, {transform_indices = @transform_6, window_bounds = array<i64: 8, 128>}]} {
    %c0 = arith.constant 0 : index
    %c0_0 = arith.constant 0 : index
    %0 = vector.load %arg1[%c0, %c0_0] : memref<8x16xf32, #tpu.memory_space<vmem>>, vector<8x16xf32>
    %1 = arith.truncf %0 : vector<8x16xf32> to vector<8x16xbf16>
    %c0_1 = arith.constant 0 : index
    %c0_2 = arith.constant 0 : index
    %2 = vector.load %arg2[%c0_1, %c0_2] : memref<16x32xbf16, #tpu.memory_space<vmem>>, vector<16x32xbf16>
    %cst = arith.constant dense<0.000000e+00> : vector<8x32xf32>
    %3 = tpu.matmul %1, %2, %cst {dimension_numbers = #tpu.dot_dimension_numbers<[1], [0], [0], [1], [0, 0, 1, 1], [], []>} : vector<8x16xbf16>, vector<16x32xbf16>, vector<8x32xf32> -> vector<8x32xf32>
    %c0_3 = arith.constant 0 : index
    %c0_4 = arith.constant 0 : index
    %4 = vector.load %arg4[%c0_3, %c0_4] : memref<2x32xf32, #tpu.memory_space<vmem>>, vector<1x32xf32>
    %5 = vector.broadcast %4 : vector<1x32xf32> to vector<8x32xf32>
    %6 = arith.addf %3, %5 : vector<8x32xf32>
    %7 = arith.negf %6 : vector<8x32xf32>
    %8 = math.exp %7 : vector<8x32xf32>
    %cst_5 = arith.constant 1.000000e+00 : f32
    %9 = vector.broadcast %cst_5 : f32 to vector<8x32xf32>
    %10 = arith.addf %9, %8 : vector<8x32xf32>
    %11 = arith.divf %9, %10 : vector<8x32xf32>
    %12 = arith.mulf %6, %11 : vector<8x32xf32>
    %13 = arith.truncf %12 : vector<8x32xf32> to vector<8x32xbf16>
    %c0_6 = arith.constant 0 : index
    %c0_7 = arith.constant 0 : index
    %14 = vector.load %arg3[%c0_6, %c0_7] : memref<32x32xbf16, #tpu.memory_space<vmem>>, vector<32x32xbf16>
    %cst_8 = arith.constant dense<0.000000e+00> : vector<8x32xf32>
    %15 = tpu.matmul %13, %14, %cst_8 {dimension_numbers = #tpu.dot_dimension_numbers<[1], [0], [0], [1], [0, 0, 1, 1], [], []>} : vector<8x32xbf16>, vector<32x32xbf16>, vector<8x32xf32> -> vector<8x32xf32>
    %c1 = arith.constant 1 : index
    %c0_9 = arith.constant 0 : index
    %16 = vector.load %arg4[%c1, %c0_9] : memref<2x32xf32, #tpu.memory_space<vmem>>, vector<1x32xf32>
    %17 = vector.broadcast %16 : vector<1x32xf32> to vector<8x32xf32>
    %18 = arith.addf %15, %17 : vector<8x32xf32>
    %19 = arith.negf %18 : vector<8x32xf32>
    %20 = math.exp %19 : vector<8x32xf32>
    %cst_10 = arith.constant 1.000000e+00 : f32
    %21 = vector.broadcast %cst_10 : f32 to vector<8x32xf32>
    %22 = arith.addf %21, %20 : vector<8x32xf32>
    %23 = arith.divf %21, %22 : vector<8x32xf32>
    %24 = arith.mulf %18, %23 : vector<8x32xf32>
    %25 = arith.truncf %24 : vector<8x32xf32> to vector<8x32xbf16>
    %c0_11 = arith.constant 0 : index
    %c0_12 = arith.constant 0 : index
    %26 = vector.load %arg5[%c0_11, %c0_12] : memref<32x128xbf16, #tpu.memory_space<vmem>>, vector<32x128xbf16>
    %cst_13 = arith.constant dense<0.000000e+00> : vector<8x128xf32>
    %27 = tpu.matmul %25, %26, %cst_13 {dimension_numbers = #tpu.dot_dimension_numbers<[1], [0], [0], [1], [0, 0, 1, 1], [], []>} : vector<8x32xbf16>, vector<32x128xbf16>, vector<8x128xf32> -> vector<8x128xf32>
    %c0_14 = arith.constant 0 : index
    %c0_15 = arith.constant 0 : index
    %28 = vector.load %arg6[%c0_14, %c0_15] : memref<1x128xf32, #tpu.memory_space<vmem>>, vector<1x128xf32>
    %29 = vector.broadcast %28 : vector<1x128xf32> to vector<8x128xf32>
    %30 = arith.addf %27, %29 : vector<8x128xf32>
    %31 = tpu.iota {dimensions = array<i32: 1>} : vector<8x128xi32>
    %cst_16 = arith.constant -9.000000e+00 : f32
    %cst_17 = arith.constant 9.000000e+00 : f32
    %32 = vector.broadcast %cst_16 : f32 to vector<8x128xf32>
    %33 = arith.maximumf %32, %30 : vector<8x128xf32>
    %34 = vector.broadcast %cst_17 : f32 to vector<8x128xf32>
    %35 = arith.minimumf %34, %33 : vector<8x128xf32>
    %cst_18 = arith.constant -5.000000e+00 : f32
    %cst_19 = arith.constant 2.000000e+00 : f32
    %36 = vector.broadcast %cst_18 : f32 to vector<8x128xf32>
    %37 = arith.maximumf %36, %30 : vector<8x128xf32>
    %38 = vector.broadcast %cst_19 : f32 to vector<8x128xf32>
    %39 = arith.minimumf %38, %37 : vector<8x128xf32>
    %40 = math.exp %39 : vector<8x128xf32>
    %c8_i32 = arith.constant 8 : i32
    %41 = vector.broadcast %c8_i32 : i32 to vector<8x128xi32>
    %42 = arith.cmpi slt, %31, %41 : vector<8x128xi32>
    %43 = arith.select %42, %35, %40 : vector<8x128xi1>, vector<8x128xf32>
    %c0_20 = arith.constant 0 : index
    %c0_21 = arith.constant 0 : index
    %44 = vector.load %arg7[%c0_20, %c0_21] : memref<8x128xf32, #tpu.memory_space<vmem>>, vector<8x128xf32>
    tpu.vector_store %arg7[%c0_20, %c0_21], %43 {strides = array<i32>} : memref<8x128xf32, #tpu.memory_space<vmem>>, vector<8x128xf32>,
    return
  }
  func.func @transform_0(%arg0: i32) -> (i32, i32) {
    %c0_i32 = arith.constant 0 : i32
    %c0_i32_0 = arith.constant 0 : i32
    return %arg0, %c0_i32 : i32, i32
  }
  func.func @transform_1(%arg0: i32) -> (i32, i32) {
    %c0_i32 = arith.constant 0 : i32
    %c0_i32_0 = arith.constant 0 : i32
    %c0_i32_1 = arith.constant 0 : i32
    return %c0_i32, %c0_i32_0 : i32, i32
  }
  func.func @transform_2(%arg0: i32) -> (i32, i32) {
    %c0_i32 = arith.constant 0 : i32
    %c0_i32_0 = arith.constant 0 : i32
    %c0_i32_1 = arith.constant 0 : i32
    return %c0_i32, %c0_i32_0 : i32, i32
  }
  func.func @transform_3(%arg0: i32) -> (i32, i32) {
    %c0_i32 = arith.constant 0 : i32
    %c0_i32_0 = arith.constant 0 : i32
    %c0_i32_1 = arith.constant 0 : i32
    return %c0_i32, %c0_i32_0 : i32, i32
  }
  func.func @transform_4(%arg0: i32) -> (i32, i32) {
    %c0_i32 = arith.constant 0 : i32
    %c0_i32_0 = arith.constant 0 : i32
    %c0_i32_1 = arith.constant 0 : i32
    return %c0_i32, %c0_i32_0 : i32, i32
  }
  func.func @transform_5(%arg0: i32) -> (i32, i32) {
    %c0_i32 = arith.constant 0 : i32
    %c0_i32_0 = arith.constant 0 : i32
    %c0_i32_1 = arith.constant 0 : i32
    return %c0_i32, %c0_i32_0 : i32, i32
  }
  func.func @transform_6(%arg0: i32) -> (i32, i32) {
    %c0_i32 = arith.constant 0 : i32
    %c0_i32_0 = arith.constant 0 : i32
    return %arg0, %c0_i32 : i32, i32
  }
}

</mosaic_0001>

<llo_original>
// kernel: tpu_custom_call.1
$region0: #{tpu_custom_call.1}
  #allocation0 [shape = 'u32[]', space=smem, size = 0x4, offset = 0x4, fixed_abs, tag = 'smem constant byte address 0x4 - core index']
  #allocation1 [shape = 'u32[144,128]{1,0:T(1,128)}', space=vmem, size = 0x12000, scoped, tag = 'internal scratch']
  %s0 = inlined_call_operand.hbm [shape: f32[8,16], index: 0, kind: input, shape index: {}]
  %s1 = inlined_call_operand.hbm [shape: bf16[16,32], index: 1, kind: input, shape index: {}]
  %s2 = inlined_call_operand.hbm [shape: bf16[32,32], index: 2, kind: input, shape index: {}]
  %s3 = inlined_call_operand.vmem [shape: f32[2,32], index: 3, kind: input, shape index: {}]
  %s4 = inlined_call_operand.hbm [shape: bf16[32,128], index: 4, kind: input, shape index: {}]
  %s5 = inlined_call_operand.vmem [shape: f32[1,128], index: 5, kind: input, shape index: {}]
  %s6 = inlined_call_operand.hbm [shape: f32[8,128], index: 6, kind: output, shape index: {}]
  %s7 = sld [smem:[#allocation0]]
  $region50: #{tpu_custom_call.1} parent=0
    _
  %s9 = ssub.s32 1, %s7
  %s10 = scalar_select 0, %s9, %s7
  $region1: #{tpu_custom_call.1} parent=0
    #allocation2 [shape = 'u8[4096]{0}', space=vmem, size = 0x1000, scoped, tag = 'input window, operand 0, single buffered']
    #allocation3 [shape = 's32[1]{0}', space=sflag, size = 0x4, scoped, tag = 'scoped memory for tpu_custom_call.1']
    #allocation4 [shape = 's32[1]{0}', space=sflag, size = 0x4, scoped, tag = 'scoped memory for tpu_custom_call.1']
    #allocation5 [shape = 'u8[4096]{0}', space=vmem, size = 0x1000, scoped, tag = 'input window, operand 1, single buffered']
    #allocation6 [shape = 's32[1]{0}', space=sflag, size = 0x4, scoped, tag = 'scoped memory for tpu_custom_call.1']
    #allocation7 [shape = 'u8[8192]{0}', space=vmem, size = 0x2000, scoped, tag = 'input window, operand 2, single buffered']
    #allocation8 [shape = 'u8[8192]{0}', space=vmem, size = 0x2000, scoped, tag = 'input window, operand 4, single buffered']
    #allocation9 [shape = 's32[1]{0}', space=sflag, size = 0x4, scoped, tag = 'scoped memory for tpu_custom_call.1']
    #allocation10 [shape = 'u8[4096]{0}', space=vmem, size = 0x1000, scoped, tag = 'output window, operand 0, single buffered']
    %11 = vsyncpa [#allocation3], 0
    %12 = vsyncpa [#allocation6], 0
    %13 = vsyncpa [#allocation9], 0
    %14 = vsyncpa [#allocation4], 0
    // Predicated region
    $region2: #{tpu_custom_call.1} parent=1 // pred_check
      _
    $region3: #{tpu_custom_call.1} parent=1 // pred_check_branch
      %16 = sbr.rel (0) target = $region5
    $region4: #{tpu_custom_call.1} parent=1 // pred_region
      %s18 = ssub.s32 128, 128
      %19 = vsyncadd [#allocation3], %s18
      %s21 = sshll.u32 [#allocation2], 4
      %s22 = int_to_ptr.vmem [resolvable:$true] %s21
      %24 = dma.hbm_to_vmem [thread:$0]  %s0, 128, %s22, [#allocation3]
    $region5: #{tpu_custom_call.1} parent=1 // pred_fallthru
      _
    // Predicated region
    $region6: #{tpu_custom_call.1} parent=1 // pred_check
      _
    $region7: #{tpu_custom_call.1} parent=1 // pred_check_branch
      %26 = sbr.rel (0) target = $region9
    $region8: #{tpu_custom_call.1} parent=1 // pred_region
      %s28 = ssub.s32 128, 128
      %29 = vsyncadd [#allocation6], %s28
      %s30 = sshll.u32 [#allocation5], 4
      %s31 = int_to_ptr.vmem [resolvable:$true] %s30
      %36 = dma.hbm_to_vmem [thread:$0]  %s1, 128, %s31, [#allocation6], 64, 64, 4
    $region9: #{tpu_custom_call.1} parent=1 // pred_fallthru
      _
    // Predicated region
    $region10: #{tpu_custom_call.1} parent=1 // pred_check
      _
    $region11: #{tpu_custom_call.1} parent=1 // pred_check_branch
      %38 = sbr.rel (0) target = $region13
    $region12: #{tpu_custom_call.1} parent=1 // pred_region
      %s40 = ssub.s32 256, 256
      %41 = vsyncadd [#allocation6], %s40
      %s42 = sshll.u32 [#allocation7], 4
      %s43 = int_to_ptr.vmem [resolvable:$true] %s42
      %48 = dma.hbm_to_vmem [thread:$0]  %s2, 256, %s43, [#allocation6], 64, 64, 4
    $region13: #{tpu_custom_call.1} parent=1 // pred_fallthru
      _
    // Predicated region
    $region14: #{tpu_custom_call.1} parent=1 // pred_check
      _
    $region15: #{tpu_custom_call.1} parent=1 // pred_check_branch
      %50 = sbr.rel (0) target = $region17
    $region16: #{tpu_custom_call.1} parent=1 // pred_region
      _
    $region17: #{tpu_custom_call.1} parent=1 // pred_fallthru
      _
    // Predicated region
    $region18: #{tpu_custom_call.1} parent=1 // pred_check
      _
    $region19: #{tpu_custom_call.1} parent=1 // pred_check_branch
      %52 = sbr.rel (0) target = $region21
    $region20: #{tpu_custom_call.1} parent=1 // pred_region
      %s54 = ssub.s32 256, 256
      %55 = vsyncadd [#allocation9], %s54
      %s56 = sshll.u32 [#allocation8], 4
      %s57 = int_to_ptr.vmem [resolvable:$true] %s56
      %62 = dma.hbm_to_vmem [thread:$0]  %s4, 256, %s57, [#allocation9], 64, 64, 4
    $region21: #{tpu_custom_call.1} parent=1 // pred_fallthru
      _
    // Predicated region
    $region22: #{tpu_custom_call.1} parent=1 // pred_check
      _
    $region23: #{tpu_custom_call.1} parent=1 // pred_check_branch
      %64 = sbr.rel (0) target = $region25
    $region24: #{tpu_custom_call.1} parent=1 // pred_region
      _
    $region25: #{tpu_custom_call.1} parent=1 // pred_fallthru
      _
    // Predicated region
    $region26: #{tpu_custom_call.1} parent=1 // pred_check
      _
    $region27: #{tpu_custom_call.1} parent=1 // pred_check_branch
      %66 = sbr.rel (0) target = $region29
    $region28: #{tpu_custom_call.1} parent=1 // pred_region
      %67 = dma.done [#allocation3], 128
    $region29: #{tpu_custom_call.1} parent=1 // pred_fallthru
      _
    // Predicated region
    $region30: #{tpu_custom_call.1} parent=1 // pred_check
      _
    $region31: #{tpu_custom_call.1} parent=1 // pred_check_branch
      %69 = sbr.rel (0) target = $region33
    $region32: #{tpu_custom_call.1} parent=1 // pred_region
      %70 = dma.done [#allocation6], 128
    $region33: #{tpu_custom_call.1} parent=1 // pred_fallthru
      _
    // Predicated region
    $region34: #{tpu_custom_call.1} parent=1 // pred_check
      _
    $region35: #{tpu_custom_call.1} parent=1 // pred_check_branch
      %72 = sbr.rel (0) target = $region37
    $region36: #{tpu_custom_call.1} parent=1 // pred_region
      %73 = dma.done [#allocation6], 256
    $region37: #{tpu_custom_call.1} parent=1 // pred_fallthru
      _
    // Predicated region
    $region38: #{tpu_custom_call.1} parent=1 // pred_check
      _
    $region39: #{tpu_custom_call.1} parent=1 // pred_check_branch
      %75 = sbr.rel (0) target = $region41
    $region40: #{tpu_custom_call.1} parent=1 // pred_region
      %76 = dma.done [#allocation9], 256
    $region41: #{tpu_custom_call.1} parent=1 // pred_fallthru
      _
    %v78 = vld [vmem:[#allocation2] sm:$0xff]
    %v79 = vpack.c.bf16 %v78, %v78
    %v80 = vld [vmem:[#allocation5] sm:$0xf]
    %v81 = vld [vmem:[#allocation5 + $0x4] sm:$0xf]
    %v82 = vld [vmem:[%s3] sm:$0x1]
    %v83 = vlaneseq
    %v84 = vshrl.u32 %v83, 7
    %v85 = vsub.s32 0, %v84
    %v86 = vrot.slane %v82, %v85
    %v89 = vunpack.c.l.b16 %v80
    %v90 = vunpack.c.l.b16 %v81
    %v91 = vpack.c.b16 %v90, %v89
    %vm93 = vcmask 130048
    %v95 = vsel %vm93, %v79, 0
    %97 = vmatprep.subr.bf16.mxu0 0
    %98 = vmatpush1.bf16.msra.mxu0 0
    %99 = vmatprep.subr.bf16.mxu0 0
    %100 = vmatpush1.bf16.msra.mxu0 0
    %101 = vmatprep.subr.bf16.mxu0 0
    %102 = vmatpush1.bf16.msra.mxu0 0
    %103 = vmatprep.subr.bf16.mxu0 0
    %104 = vmatpush1.bf16.msra.mxu0 0
    %105 = vmatprep.subr.bf16.mxu0 0
    %106 = vmatpush1.bf16.msra.mxu0 0
    %107 = vmatprep.subr.bf16.mxu0 0
    %108 = vmatpush1.bf16.msra.mxu0 0
    %109 = vmatprep.subr.bf16.mxu0 0
    %110 = vmatpush1.bf16.msra.mxu0 0
    %111 = vmatprep.subr.bf16.mxu0 0
    %112 = vmatpush1.bf16.msra.mxu0 %v91
    %113 = vmatprep.subr.bf16.mxu0 0
    %114 = vmatpush2.bf16.msra.mxu0 0
    %115 = vmatprep.subr.bf16.mxu0 0
    %116 = vmatpush2.bf16.msra.mxu0 0
    %117 = vmatprep.subr.bf16.mxu0 0
    %118 = vmatpush2.bf16.msra.mxu0 0
    %119 = vmatprep.subr.bf16.mxu0 0
    %120 = vmatpush2.bf16.msra.mxu0 0
    %121 = vmatprep.subr.bf16.mxu0 0
    %122 = vmatpush2.bf16.msra.mxu0 0
    %123 = vmatprep.subr.bf16.mxu0 0
    %124 = vmatpush2.bf16.msra.mxu0 0
    %125 = vmatprep.subr.bf16.mxu0 0
    %126 = vmatpush2.bf16.msra.mxu0 0
    %127 = vmatprep.subr.bf16.mxu0 0
    %128 = vmatpush2.bf16.msra.mxu0 0
    %129 = vmatprep.mubr.bf16.mxu0 0
    %130 = vmatmul.mubr.bf16.gmra.mxu0 %v95
    %v131 = vpop.f32.mrf.mxu0
    %v132 = vadd.f32 %v86, %v131
    %v133 = vpop.f32.mrf.mxu0
    %v134 = vpop.f32.mrf.mxu0
    %v135 = vpop.f32.mrf.mxu0
    %136 = vdwg.mxu0
    %v137 = vxor.u32 %v132, 2147483648
    %v138 = vmul.f32 %v137, 1.442695
    %v139 = vpow.pop %v138
    %v140 = vadd.f32 %v139, 1.0
    %v141 = vrcp.pop %v140
    %v142 = vmul.f32 1.0, %v141
    %v143 = vmul.f32 %v132, %v142
    %v144 = vpack.c.bf16 %v143, %v143
    %v145 = vld [vmem:[#allocation7] sm:$0xf]
    %v146 = vld [vmem:[#allocation7 + $0x4] sm:$0xf]
    %v147 = vld [vmem:[#allocation7 + $0x8] sm:$0xf]
    %v148 = vld [vmem:[#allocation7 + $0xc] sm:$0xf]
    %v149 = vld [vmem:[%s3 + $0x1] sm:$0x1]
    %v150 = vlaneseq
    %v151 = vshrl.u32 %v150, 7
    %v152 = vsub.s32 0, %v151
    %v153 = vrot.slane %v149, %v152
    %v158 = vunpack.c.l.b16 %v145
    %v159 = vunpack.c.l.b16 %v146
    %v160 = vunpack.c.l.b16 %v147
    %v161 = vunpack.c.l.b16 %v148
    %v162 = vpack.c.b16 %v159, %v158
    %v163 = vpack.c.b16 %v161, %v160
    %vm166 = vcmask 261120
    %v168 = vsel %vm166, %v144, 0
    %170 = vmatprep.subr.bf16.mxu0 0
    %171 = vmatpush1.bf16.msra.mxu0 0
    %172 = vmatprep.subr.bf16.mxu0 0
    %173 = vmatpush1.bf16.msra.mxu0 0
    %174 = vmatprep.subr.bf16.mxu0 0
    %175 = vmatpush1.bf16.msra.mxu0 0
    %176 = vmatprep.subr.bf16.mxu0 0
    %177 = vmatpush1.bf16.msra.mxu0 0
    %178 = vmatprep.subr.bf16.mxu0 0
    %179 = vmatpush1.bf16.msra.mxu0 0
    %180 = vmatprep.subr.bf16.mxu0 0
    %181 = vmatpush1.bf16.msra.mxu0 0
    %182 = vmatprep.subr.bf16.mxu0 0
    %183 = vmatpush1.bf16.msra.mxu0 %v163
    %184 = vmatprep.subr.bf16.mxu0 0
    %185 = vmatpush1.bf16.msra.mxu0 %v162
    %186 = vmatprep.subr.bf16.mxu0 0
    %187 = vmatpush2.bf16.msra.mxu0 0
    %188 = vmatprep.subr.bf16.mxu0 0
    %189 = vmatpush2.bf16.msra.mxu0 0
    %190 = vmatprep.subr.bf16.mxu0 0
    %191 = vmatpush2.bf16.msra.mxu0 0
    %192 = vmatprep.subr.bf16.mxu0 0
    %193 = vmatpush2.bf16.msra.mxu0 0
    %194 = vmatprep.subr.bf16.mxu0 0
    %195 = vmatpush2.bf16.msra.mxu0 0
    %196 = vmatprep.subr.bf16.mxu0 0
    %197 = vmatpush2.bf16.msra.mxu0 0
    %198 = vmatprep.subr.bf16.mxu0 0
    %199 = vmatpush2.bf16.msra.mxu0 0
    %200 = vmatprep.subr.bf16.mxu0 0
    %201 = vmatpush2.bf16.msra.mxu0 0
    %202 = vmatprep.mubr.bf16.mxu0 0
    %203 = vmatmul.mubr.bf16.gmra.mxu0 %v168
    %v204 = vpop.f32.mrf.mxu0
    %v205 = vadd.f32 %v153, %v204
    %v206 = vpop.f32.mrf.mxu0
    %v207 = vpop.f32.mrf.mxu0
    %v208 = vpop.f32.mrf.mxu0
    %209 = vdwg.mxu0
    %v210 = vxor.u32 %v205, 2147483648
    %v211 = vmul.f32 %v210, 1.442695
    %v212 = vpow.pop %v211
    %v213 = vadd.f32 %v212, 1.0
    %v214 = vrcp.pop %v213
    %v215 = vmul.f32 1.0, %v214
    %v216 = vmul.f32 %v205, %v215
    %v217 = vpack.c.bf16 %v216, %v216
    %v218 = vld [vmem:[#allocation8] sm:$0xf]
    %v219 = vld [vmem:[#allocation8 + $0x4] sm:$0xf]
    %v220 = vld [vmem:[#allocation8 + $0x8] sm:$0xf]
    %v221 = vld [vmem:[#allocation8 + $0xc] sm:$0xf]
    %v222 = vld [vmem:[%s5] sm:$0x1]
    %v224 = vlaneseq
    %v225 = vshrl.u32 %v224, 7
    %v226 = vsub.s32 0, %v225
    %v227 = vrot.slane %v222, %v226
    %v233 = vunpack.c.l.b16 %v218
    %v234 = vunpack.c.l.b16 %v219
    %v235 = vunpack.c.l.b16 %v220
    %v236 = vunpack.c.l.b16 %v221
    %v237 = vpack.c.b16 %v234, %v233
    %v238 = vpack.c.b16 %v236, %v235
    %v242 = vsel %vm166, %v217, 0
    %244 = vmatprep.subr.bf16.mxu0 0
    %245 = vmatpush1.bf16.msra.mxu0 0
    %246 = vmatprep.subr.bf16.mxu0 0
    %247 = vmatpush1.bf16.msra.mxu0 0
    %248 = vmatprep.subr.bf16.mxu0 0
    %249 = vmatpush1.bf16.msra.mxu0 0
    %250 = vmatprep.subr.bf16.mxu0 0
    %251 = vmatpush1.bf16.msra.mxu0 0
    %252 = vmatprep.subr.bf16.mxu0 0
    %253 = vmatpush1.bf16.msra.mxu0 0
    %254 = vmatprep.subr.bf16.mxu0 0
    %255 = vmatpush1.bf16.msra.mxu0 0
    %256 = vmatprep.subr.bf16.mxu0 0
    %257 = vmatpush1.bf16.msra.mxu0 %v238
    %258 = vmatprep.subr.bf16.mxu0 0
    %259 = vmatpush1.bf16.msra.mxu0 %v237
    %260 = vmatprep.subr.bf16.mxu0 0
    %261 = vmatpush2.bf16.msra.mxu0 0
    %262 = vmatprep.subr.bf16.mxu0 0
    %263 = vmatpush2.bf16.msra.mxu0 0
    %264 = vmatprep.subr.bf16.mxu0 0
    %265 = vmatpush2.bf16.msra.mxu0 0
    %266 = vmatprep.subr.bf16.mxu0 0
    %267 = vmatpush2.bf16.msra.mxu0 0
    %268 = vmatprep.subr.bf16.mxu0 0
    %269 = vmatpush2.bf16.msra.mxu0 0
    %270 = vmatprep.subr.bf16.mxu0 0
    %271 = vmatpush2.bf16.msra.mxu0 0
    %272 = vmatprep.subr.bf16.mxu0 0
    %273 = vmatpush2.bf16.msra.mxu0 0
    %274 = vmatprep.subr.bf16.mxu0 0
    %275 = vmatpush2.bf16.msra.mxu0 0
    %276 = vmatprep.mubr.bf16.mxu0 0
    %277 = vmatmul.mubr.bf16.gmra.mxu0 %v242
    %v278 = vpop.f32.mrf.mxu0
    %v279 = vadd.f32 %v227, %v278
    %v280 = vpop.f32.mrf.mxu0
    %v281 = vpop.f32.mrf.mxu0
    %v282 = vpop.f32.mrf.mxu0
    %283 = vdwg.mxu0
    %v284 = vlaneseq
    %v285 = vand.u32 %v284, 127
    %v286 = vmax.f32 %v279, -9.0
    %v287 = vmin.f32 %v286, 9.0
    %v288 = vmax.f32 %v279, -5.0
    %v289 = vmin.f32 %v288, 2.0
    %v290 = vmul.f32 %v289, 1.442695
    %v291 = vpow.pop %v290
    %vm292 = vcmp.lt.s32.totalorder %v285, 8
    %v293 = vsel %vm292, %v287, %v291
    %294 = vst [vmem:[#allocation10] sm:$0xff] %v293
    // Predicated region
    $region42: #{tpu_custom_call.1} parent=1 // pred_check
      _
    $region43: #{tpu_custom_call.1} parent=1 // pred_check_branch
      %296 = sbr.rel (0) target = $region45
    $region44: #{tpu_custom_call.1} parent=1 // pred_region
      %s298 = ssub.s32 128, 128
      %299 = vsyncadd [#allocation4], %s298
      %s301 = sshll.u32 [#allocation10], 4
      %s302 = int_to_ptr.vmem [resolvable:$true] %s301
      %304 = dma.vmem_to_hbm [thread:$0]  %s302, 128, %s6, [#allocation4]
    $region45: #{tpu_custom_call.1} parent=1 // pred_fallthru
      _
    // Predicated region
    $region46: #{tpu_custom_call.1} parent=1 // pred_check
      _
    $region47: #{tpu_custom_call.1} parent=1 // pred_check_branch
      %306 = sbr.rel (0) target = $region49
    $region48: #{tpu_custom_call.1} parent=1 // pred_region
      %307 = dma.done [#allocation4], 128
    $region49: #{tpu_custom_call.1} parent=1 // pred_fallthru
      _
    %308 = vsyncpa [#allocation3], 1
    %309 = vsyncpa [#allocation6], 1
    %310 = vsyncpa [#allocation9], 1
    %311 = vsyncpa [#allocation4], 1

</llo_original>
